<compile_context>
chip_gen: v6e
topology: v6e:2x2x1
jax: 0.10.0
libtpu: 0.0.40
codegen_flags: <defaults>
</compile_context>

<pallas_src>
import functools

import jax
import jax.numpy as jnp
from jax.experimental import pallas as pl
from jax.experimental.pallas import tpu as pltpu


_NEG_SLOPE = 0.01  # nn.LeakyReLU() default negative_slope


def _conv_lrelu_kernel(p_ref, w_ref, b_ref, o_ref):
    # p_ref: (K, TM)    bf16 im2col patch tile (lanes = TM output pixels)
    # w_ref: (Cout, K)  bf16 conv weight, resident across the whole grid
    # b_ref: (Cout, 1)  f32 bias, resident across the whole grid
    # o_ref: (Cout, TM) output tile (batch dim squeezed away by the BlockSpec)
    acc = jnp.dot(w_ref[...], p_ref[...], preferred_element_type=jnp.float32)
    acc = acc + b_ref[...]                              # broadcast over lanes
    o_ref[...] = jnp.where(acc > 0, acc, _NEG_SLOPE * acc).astype(o_ref.dtype)


def _cdiv(a, b):
    return -(-a // b)


def _round_up(a, b):
    return _cdiv(a, b) * b


def _im2col(x, kh, kw, stride, padding):
    """x: (B, Cin, H, W) -> (B, Cin*kh*kw, OH*OW) patches (batch-major, no
    transpose), plus (OH, OW)."""
    B, Cin, H, W = x.shape
    OH = (H + 2 * padding - kh) // stride + 1
    OW = (W + 2 * padding - kw) // stride + 1
    xp = jnp.pad(x, ((0, 0), (0, 0), (padding, padding), (padding, padding)))
    taps = []
    for ky in range(kh):
        for kx in range(kw):
            taps.append(
                xp[:, :, ky:ky + stride * OH:stride, kx:kx + stride * OW:stride]
            )  # (B, Cin, OH, OW)
    # (B, Cin, kh*kw, OH, OW): flattening (Cin, kh*kw) matches PyTorch's
    # weight.reshape(Cout, Cin*kh*kw) ordering.
    patches = jnp.stack(taps, axis=2)
    return patches.reshape(B, Cin * kh * kw, OH * OW), OH, OW


@functools.partial(
    jax.jit,
    static_argnames=("kernel_size", "stride", "padding", "tile_m", "out_dtype"))
def leaky_relu_conv2d(x, weight, bias, *, kernel_size, stride, padding,
                      tile_m=4096, out_dtype=None):
    """NCHW Conv2d(bias=True) fused with LeakyReLU(0.01).

    x: (B, Cin, H, W); weight: (Cout, Cin, kh, kw); bias: (Cout,).
    Returns (B, Cout, OH, OW) in out_dtype (default x.dtype; pass jnp.bfloat16
    to halve output HBM traffic if downstream consumers accept it).
    """
    B, Cin, H, W = x.shape
    Cout = weight.shape[0]
    kh = kw = kernel_size
    out_dtype = x.dtype if out_dtype is None else out_dtype

    # bf16 inputs halve HBM traffic for this memory-bound kernel; the
    # accumulate + bias + LeakyReLU stay f32 inside the kernel.
    patches, OH, OW = _im2col(x.astype(jnp.bfloat16), kh, kw, stride, padding)
    _, K, M = patches.shape                          # M = OH*OW per image
    w_mat = weight.reshape(Cout, Cin * kh * kw).astype(jnp.bfloat16)
    b_mat = bias.reshape(Cout, 1).astype(jnp.float32)

    # Lane tile over M: a multiple of 128 unless a single tile covers all of a
    # (small) M. No jnp.pad of the patch matrix -- a ragged last tile is
    # handled by Pallas' masked boundary blocks; garbage lanes live only in
    # output columns that are never written back (discarded), never read.
    if M <= 128:
        TM = M
    else:
        TM = min(_round_up(tile_m, 128), _round_up(M, 128))
        if B * _cdiv(M, TM) < 2:
            # v7x: give the 2nd TensorCore work when batch alone can't
            # (both grid axes are "parallel"); no-op on v5e/v6e.
            TM = min(TM, _round_up(_cdiv(M, 2), 128))
    grid_m = _cdiv(M, TM)

    cost = pl.CostEstimate(
        flops=2 * B * M * K * Cout,
        transcendentals=0,
        bytes_accessed=(B * K * M * 2 + Cout * K * 2 + Cout * 4
                        + B * Cout * M * jnp.dtype(out_dtype).itemsize),
    )

    out_flat = pl.pallas_call(
        _conv_lrelu_kernel,
        out_shape=jax.ShapeDtypeStruct((B, Cout, M), out_dtype),
        grid_spec=pltpu.PrefetchScalarGridSpec(
            num_scalar_prefetch=0,
            grid=(B, grid_m),
            in_specs=[
                # patch tile: batch dim squeezed, lanes = TM output pixels
                pl.BlockSpec((None, K, TM), lambda b, i: (b, 0, i)),
                pl.BlockSpec((Cout, K), lambda b, i: (0, 0)),   # weight (resident)
                pl.BlockSpec((Cout, 1), lambda b, i: (0, 0)),   # bias (resident)
            ],
            out_specs=pl.BlockSpec((None, Cout, TM), lambda b, i: (b, 0, i)),
        ),
        compiler_params=pltpu.CompilerParams(
            # Both axes are independent -> v7x megacore shards B x M tiles
            # across its 2 TensorCores; neutral on v5e/v6e (1 TC). VMEM per
            # step is a few hundred KiB, well under every default scoped limit.
            dimension_semantics=("parallel", "parallel"),
        ),
        cost_estimate=cost,
    )(patches, w_mat, b_mat)

    # (B, Cout, OH*OW) -> (B, Cout, OH, OW): free reshape, no transpose pass.
    return out_flat.reshape(B, Cout, OH, OW)


def _reference(x, weight, bias, stride, padding):
    # XLA conv + bias + LeakyReLU, using the same bf16-cast inputs / f32 acc.
    ref = jax.lax.conv_general_dilated(
        x.astype(jnp.bfloat16), weight.astype(jnp.bfloat16),
        window_strides=(stride, stride),
        padding=[(padding, padding), (padding, padding)],
        dimension_numbers=("NCHW", "OIHW", "NCHW"),
        preferred_element_type=jnp.float32,
    ) + bias.reshape(1, -1, 1, 1)
    return jnp.where(ref > 0, ref, _NEG_SLOPE * ref).astype(x.dtype)


if __name__ == "__main__":
    # LeakyReLUConv2d(n_in=4, n_out=8, kernel_size=3, stride=2, padding=1)
    n_in, n_out = 4, 8
    kernel_size, stride, padding = 3, 2, 1

    key = jax.random.PRNGKey(0)
    kx, kw_, kb = jax.random.split(key, 3)

    # gaussian_weights_init: weight ~ N(0, 0.02)
    weight = 0.02 * jax.random.normal(
        kw_, (n_out, n_in, kernel_size, kernel_size), dtype=jnp.float32)
    # PyTorch Conv2d default bias init: U(-1/sqrt(fan_in), 1/sqrt(fan_in))
    fan_in = n_in * kernel_size * kernel_size
    bound = 1.0 / (fan_in ** 0.5)
    bias = jax.random.uniform(kb, (n_out,), dtype=jnp.float32,
                              minval=-bound, maxval=bound)

    # Small shape consistent with the module: (B, C, H, W) = (2, 4, 16, 16).
    B, H, W = 2, 16, 16
    x = jax.random.normal(kx, (B, n_in, H, W), dtype=jnp.float32)
    out = leaky_relu_conv2d(x, weight, bias, kernel_size=kernel_size,
                            stride=stride, padding=padding)
    out = jax.block_until_ready(out)
    ref = _reference(x, weight, bias, stride, padding)
    assert out.shape == (B, n_out, H // stride, W // stride), out.shape
    assert jnp.allclose(out, ref, atol=1e-4, rtol=1e-4), \
        float(jnp.max(jnp.abs(out - ref)))

    # Second (still small) run exercising the multi-tile, lane-dense pipelined
    # path and the 2-D parallel grid: 32x32 input -> M = 256 per image,
    # tile_m=128 -> grid (B=2, grid_m=2).
    B2, H2, W2 = 2, 32, 32
    x2 = jax.random.normal(jax.random.PRNGKey(1), (B2, n_in, H2, W2),
                           dtype=jnp.float32)
    out2 = leaky_relu_conv2d(x2, weight, bias, kernel_size=kernel_size,
                             stride=stride, padding=padding, tile_m=128)
    out2 = jax.block_until_ready(out2)
    ref2 = _reference(x2, weight, bias, stride, padding)
    assert out2.shape == (B2, n_out, H2 // stride, W2 // stride), out2.shape
    assert jnp.allclose(out2, ref2, atol=1e-4, rtol=1e-4), \
        float(jnp.max(jnp.abs(out2 - ref2)))

    print("KERNEL_OK")
</pallas_src>

<mosaic_0001>
module attributes {stable_mosaic.version = 11 : i64} {
  func.func @_conv_lrelu_kernel(%arg0: i32, %arg1: i32, %arg2: memref<1x36x64xbf16, #tpu.memory_space<vmem>>, %arg3: memref<8x36xbf16, #tpu.memory_space<vmem>>, %arg4: memref<8x1xf32, #tpu.memory_space<vmem>>, %arg5: memref<1x8x64xf32, #tpu.memory_space<vmem>>) attributes {dimension_semantics = [#tpu.dimension_semantics<parallel>, #tpu.dimension_semantics<parallel>], iteration_bounds = array<i64: 2, 1>, scalar_prefetch = 0 : i64, scratch_operands = 0 : i64, tpu.core_type = #tpu.core_type<tc>, window_params = [{transform_indices = @transform_0, window_bounds = array<i64: 1, 36, 64>}, {pipeline_mode = #tpu.pipeline_mode<synchronous>, transform_indices = @transform_1, window_bounds = array<i64: 8, 36>}, {pipeline_mode = #tpu.pipeline_mode<synchronous>, transform_indices = @transform_2, window_bounds = array<i64: 8, 1>}, {transform_indices = @transform_3, window_bounds = array<i64: 1, 8, 64>}]} {
    %c0 = arith.constant 0 : index
    %c0_0 = arith.constant 0 : index
    %0 = vector.load %arg3[%c0, %c0_0] : memref<8x36xbf16, #tpu.memory_space<vmem>>, vector<8x36xbf16>
    %c0_1 = arith.constant 0 : index
    %c0_2 = arith.constant 0 : index
    %c0_3 = arith.constant 0 : index
    %1 = vector.load %arg2[%c0_1, %c0_2, %c0_3] : memref<1x36x64xbf16, #tpu.memory_space<vmem>>, vector<1x36x64xbf16>
    %2 = vector.shape_cast %1 : vector<1x36x64xbf16> to vector<36x64xbf16>
    %cst = arith.constant dense<0.000000e+00> : vector<8x64xf32>
    %3 = tpu.matmul %0, %2, %cst {dimension_numbers = #tpu.dot_dimension_numbers<[1], [0], [0], [1], [0, 0, 1, 1], [], []>} : vector<8x36xbf16>, vector<36x64xbf16>, vector<8x64xf32> -> vector<8x64xf32>
    %c0_4 = arith.constant 0 : index
    %c0_5 = arith.constant 0 : index
    %4 = vector.load %arg4[%c0_4, %c0_5] : memref<8x1xf32, #tpu.memory_space<vmem>>, vector<8x1xf32>
    %5 = vector.broadcast %4 : vector<8x1xf32> to vector<8x64xf32>
    %6 = arith.addf %3, %5 : vector<8x64xf32>
    %cst_6 = arith.constant 0.000000e+00 : f32
    %7 = vector.broadcast %cst_6 : f32 to vector<8x64xf32>
    %8 = arith.cmpf ogt, %6, %7 : vector<8x64xf32>
    %cst_7 = arith.constant 0.00999999977 : f32
    %9 = vector.broadcast %cst_7 : f32 to vector<8x64xf32>
    %10 = arith.mulf %9, %6 : vector<8x64xf32>
    %11 = arith.select %8, %6, %10 : vector<8x64xi1>, vector<8x64xf32>
    %c0_8 = arith.constant 0 : index
    %c0_9 = arith.constant 0 : index
    %c0_10 = arith.constant 0 : index
    %12 = vector.load %arg5[%c0_8, %c0_9, %c0_10] : memref<1x8x64xf32, #tpu.memory_space<vmem>>, vector<1x8x64xf32>
    %13 = vector.shape_cast %12 : vector<1x8x64xf32> to vector<8x64xf32>
    %14 = vector.shape_cast %11 : vector<8x64xf32> to vector<1x8x64xf32>
    tpu.vector_store %arg5[%c0_8, %c0_9, %c0_10], %14 {strides = array<i32>} : memref<1x8x64xf32, #tpu.memory_space<vmem>>, vector<1x8x64xf32>,
    return
  }
  func.func @transform_0(%arg0: i32, %arg1: i32) -> (i32, i32, i32) {
    %c0_i32 = arith.constant 0 : i32
    %c0_i32_0 = arith.constant 0 : i32
    return %arg0, %c0_i32, %arg1 : i32, i32, i32
  }
  func.func @transform_1(%arg0: i32, %arg1: i32) -> (i32, i32) {
    %c0_i32 = arith.constant 0 : i32
    %c0_i32_0 = arith.constant 0 : i32
    %c0_i32_1 = arith.constant 0 : i32
    return %c0_i32, %c0_i32_0 : i32, i32
  }
  func.func @transform_2(%arg0: i32, %arg1: i32) -> (i32, i32) {
    %c0_i32 = arith.constant 0 : i32
    %c0_i32_0 = arith.constant 0 : i32
    %c0_i32_1 = arith.constant 0 : i32
    return %c0_i32, %c0_i32_0 : i32, i32
  }
  func.func @transform_3(%arg0: i32, %arg1: i32) -> (i32, i32, i32) {
    %c0_i32 = arith.constant 0 : i32
    %c0_i32_0 = arith.constant 0 : i32
    return %arg0, %c0_i32, %arg1 : i32, i32, i32
  }
}

</mosaic_0001>

<llo_original>
// kernel: leaky_relu_conv2d.1
$region0: #{leaky_relu_conv2d.1}
  #allocation0 [shape = 'u32[]', space=smem, size = 0x4, offset = 0x4, fixed_abs, tag = 'smem constant byte address 0x4 - core index']
  #allocation1 [shape = 'u32[144,128]{1,0:T(1,128)}', space=vmem, size = 0x12000, scoped, tag = 'internal scratch']
  %s0 = inlined_call_operand.vmem [shape: bf16[2,36,64], index: 0, kind: input, shape index: {}]
  %s1 = inlined_call_operand.vmem [shape: bf16[8,36], index: 1, kind: input, shape index: {}]
  %s2 = inlined_call_operand.vmem [shape: f32[8,1], index: 2, kind: input, shape index: {}]
  %s3 = inlined_call_operand.vmem [shape: f32[2,8,64], index: 3, kind: output, shape index: {}]
  %s4 = sld [smem:[#allocation0]]
  $region45: #{leaky_relu_conv2d.1} parent=0
    _
  %s6 = ssub.s32 1, %s4
  %s7 = scalar_select 0, %s6, %s4
  loop: start=0, step=1, limit=4
  $region2: #{leaky_relu_conv2d.1} parent=0 // loop_pre_header
    _
  $region3: #{leaky_relu_conv2d.1} parent=0 // loop_header
    %s9 = sphi 0, %s13
    %p10 = scmp.ge.s32.totalorder %s9, 4
    %s16 = sphi 0, %s28
    %s17 = sphi 0, %s24
    %s18 = sphi 0, %s16
    %s19 = sphi 0, %s17
    %s20 = sphi 0, %s18
    %s21 = sphi 0, %s19
    %s33 = sphi 0, %s35
    %s36 = sphi 0, %s33
    %s37 = sphi 0, %s36
    %s53 = sphi 0, %s37
    %s57 = sphi 0, %s57
    %s59 = sphi 0, %s57
    %s60 = sphi 0, %s59
    %s74 = sphi 0, %s60
    %s78 = sphi 0, %s78
    %s80 = sphi 0, %s78
    %s81 = sphi 0, %s80
    %s95 = sphi 0, %s81
    %s103 = sphi 0, %s105
    %s106 = sphi 0, %s103
    %s107 = sphi 0, %s106
    %s123 = sphi 0, %s107
  $region4: #{leaky_relu_conv2d.1} parent=0 // loop_header_branch
    %12 = sbr.rel (%p10) target = $region8
  $region5: #{leaky_relu_conv2d.1} parent=0 // loop_body
    %s14 = ssub.s32 %s9, 1
    %s15 = ssub.s32 %s9, 2
    %s22 = sadd.s32 1, %s17
    %p23 = scmp.ge.s32.totalorder %s22, 1
    %s24 = scalar_select %p23, 0, %s22
    %s25 = sadd.s32 1, %s16
    %s26 = scalar_select %p23, %s25, %s16
    %p27 = scmp.ge.s32.totalorder %s26, 2
    %s28 = scalar_select %p27, 0, %s26
    %s29 = ssub.s32 %s16, %s28
    %s30 = ssub.s32 %s17, %s24
    %s31 = sor.u32 %s29, %s30
    %p32 = scmp.eq.s32.totalorder %s31, 0
    %s34 = sadd.s32 %s33, 1
    %s35 = scalar_select %p32, %s33, %s34
    %p38 = pneg %p32
    %p39 = scmp.eq.s32.totalorder %s9, 1
    %p40 = por %p38, %p39
    %p41 = scmp.ne.s32.totalorder %s33, %s36
    %p42 = scmp.eq.s32.totalorder %s9, 0
    %p43 = por %p41, %p42
    %p44 = scmp.ne.s32.totalorder %s33, %s36
    %p45 = scmp.eq.s32.totalorder %s14, 1
    %p46 = por %p44, %p45
    %p47 = scmp.ne.s32.totalorder %s36, %s37
    %p48 = scmp.eq.s32.totalorder %s14, 0
    %p49 = por %p47, %p48
    %p50 = scmp.ne.s32.totalorder %s36, %s37
    %p51 = scmp.eq.s32.totalorder %s15, 1
    %p52 = por %p50, %p51
    %p54 = scmp.ne.s32.totalorder %s37, %s53
    %p55 = scmp.eq.s32.totalorder %s15, 0
    %p56 = por %p54, %p55
    %s58 = sadd.s32 %s57, 1
    %p61 = scmp.eq.s32.totalorder %s9, 1
    %p62 = scmp.ne.s32.totalorder %s57, %s59
    %p63 = scmp.eq.s32.totalorder %s9, 0
    %p64 = por %p62, %p63
    %p65 = scmp.ne.s32.totalorder %s57, %s59
    %p66 = scmp.eq.s32.totalorder %s14, 1
    %p67 = por %p65, %p66
    %p68 = scmp.ne.s32.totalorder %s59, %s60
    %p69 = scmp.eq.s32.totalorder %s14, 0
    %p70 = por %p68, %p69
    %p71 = scmp.ne.s32.totalorder %s59, %s60
    %p72 = scmp.eq.s32.totalorder %s15, 1
    %p73 = por %p71, %p72
    %p75 = scmp.ne.s32.totalorder %s60, %s74
    %p76 = scmp.eq.s32.totalorder %s15, 0
    %p77 = por %p75, %p76
    %s79 = sadd.s32 %s78, 1
    %p82 = scmp.eq.s32.totalorder %s9, 1
    %p83 = scmp.ne.s32.totalorder %s78, %s80
    %p84 = scmp.eq.s32.totalorder %s9, 0
    %p85 = por %p83, %p84
    %p86 = scmp.ne.s32.totalorder %s78, %s80
    %p87 = scmp.eq.s32.totalorder %s14, 1
    %p88 = por %p86, %p87
    %p89 = scmp.ne.s32.totalorder %s80, %s81
    %p90 = scmp.eq.s32.totalorder %s14, 0
    %p91 = por %p89, %p90
    %p92 = scmp.ne.s32.totalorder %s80, %s81
    %p93 = scmp.eq.s32.totalorder %s15, 1
    %p94 = por %p92, %p93
    %p96 = scmp.ne.s32.totalorder %s81, %s95
    %p97 = scmp.eq.s32.totalorder %s15, 0
    %p98 = por %p96, %p97
    %s99 = ssub.s32 %s16, %s28
    %s100 = ssub.s32 %s17, %s24
    %s101 = sor.u32 %s99, %s100
    %p102 = scmp.eq.s32.totalorder %s101, 0
    %s104 = sadd.s32 %s103, 1
    %s105 = scalar_select %p102, %s103, %s104
    %p108 = pneg %p102
    %p109 = scmp.eq.s32.totalorder %s9, 1
    %p110 = por %p108, %p109
    %p111 = scmp.ne.s32.totalorder %s103, %s106
    %p112 = scmp.eq.s32.totalorder %s9, 0
    %p113 = por %p111, %p112
    %p114 = scmp.ne.s32.totalorder %s103, %s106
    %p115 = scmp.eq.s32.totalorder %s14, 1
    %p116 = por %p114, %p115
    %p117 = scmp.ne.s32.totalorder %s106, %s107
    %p118 = scmp.eq.s32.totalorder %s14, 0
    %p119 = por %p117, %p118
    %p120 = scmp.ne.s32.totalorder %s106, %s107
    %p121 = scmp.eq.s32.totalorder %s15, 1
    %p122 = por %p120, %p121
    %p124 = scmp.ne.s32.totalorder %s107, %s123
    %p125 = scmp.eq.s32.totalorder %s15, 0
    %p126 = por %p124, %p125
    %p127 = scmp.le.s32.totalorder 1, %s9
    %p128 = scmp.lt.s32.totalorder %s9, 3
    %p129 = pnand %p127, %p128
    %p130 = pneg %p129
    // Predicated region
    $region9: #{leaky_relu_conv2d.1} parent=5 // pred_check
      _
    $region10: #{leaky_relu_conv2d.1} parent=5 // pred_check_branch
      %132 = sbr.rel (%p129) target = $region12
    $region11: #{leaky_relu_conv2d.1} parent=5 // pred_region
      %s133 = ssub.s32 %s9, 1
      // Predicated region
      $region13: #{leaky_relu_conv2d.1} parent=11 // pred_check
        %p134 = pneg %p70
      $region14: #{leaky_relu_conv2d.1} parent=11 // pred_check_branch
        %136 = sbr.rel (%p134) target = $region16
      $region15: #{leaky_relu_conv2d.1} parent=11 // pred_region
        _
      $region16: #{leaky_relu_conv2d.1} parent=11 // pred_fallthru
        _
      // Predicated region
      $region17: #{leaky_relu_conv2d.1} parent=11 // pred_check
        %p137 = pneg %p91
      $region18: #{leaky_relu_conv2d.1} parent=11 // pred_check_branch
        %139 = sbr.rel (%p137) target = $region20
      $region19: #{leaky_relu_conv2d.1} parent=11 // pred_region
        _
      $region20: #{leaky_relu_conv2d.1} parent=11 // pred_fallthru
        _
    $region12: #{leaky_relu_conv2d.1} parent=5 // pred_fallthru
      _
    %p140 = scmp.lt.s32.totalorder %s9, 2
    // Predicated region
    $region21: #{leaky_relu_conv2d.1} parent=5 // pred_check
      %p141 = pneg %p140
    $region22: #{leaky_relu_conv2d.1} parent=5 // pred_check_branch
      %143 = sbr.rel (%p141) target = $region24
    $region23: #{leaky_relu_conv2d.1} parent=5 // pred_region
      // Predicated region
      $region25: #{leaky_relu_conv2d.1} parent=23 // pred_check
        %p144 = pneg %p43
      $region26: #{leaky_relu_conv2d.1} parent=23 // pred_check_branch
        %146 = sbr.rel (%p144) target = $region28
      $region27: #{leaky_relu_conv2d.1} parent=23 // pred_region
        %p147 = scmp.lt.s32.totalorder %s16, 1
        %s148 = scalar_select %p147, %s16, 1
        %p149 = scmp.lt.s32.totalorder %s17, 0
        %s150 = scalar_select %p149, %s17, 0
        %s151 = smul.addr %s148, 5
        %s152 = sadd.s32 %s150, %s151
        %s153 = smul.addr %s152, 4
        %s154 = scalar_lea.vmem %s0, %s153
      $region28: #{leaky_relu_conv2d.1} parent=23 // pred_fallthru
        _
    $region24: #{leaky_relu_conv2d.1} parent=5 // pred_fallthru
      _
    %p155 = scmp.le.s32.totalorder 1, %s9
    %p156 = scmp.lt.s32.totalorder %s9, 3
    %p157 = pnand %p155, %p156
    %p158 = pneg %p157
    // Predicated region
    $region29: #{leaky_relu_conv2d.1} parent=5 // pred_check
      _
    $region30: #{leaky_relu_conv2d.1} parent=5 // pred_check_branch
      %160 = sbr.rel (%p157) target = $region32
    $region31: #{leaky_relu_conv2d.1} parent=5 // pred_region
      %s161 = ssub.s32 %s9, 1
      %p162 = scmp.lt.s32.totalorder %s18, 1
      %s163 = scalar_select %p162, %s18, 1
      %p164 = scmp.lt.s32.totalorder %s19, 0
      %s165 = scalar_select %p164, %s19, 0
      %s166 = smul.addr %s163, 5
      %s167 = sadd.s32 %s165, %s166
      %s168 = smul.addr %s167, 4
      %s169 = scalar_lea.vmem %s0, %s168
      %p170 = pneg %p49
      %p171 = pneg %p46
      %p172 = pneg %p70
      %p173 = pneg %p67
      %p174 = pneg %p91
      %p175 = pneg %p88
      %p176 = pneg %p119
      %p177 = pneg %p116
      %p178 = scmp.lt.s32.totalorder %s18, 1
      %s179 = scalar_select %p178, %s18, 1
      %p180 = scmp.lt.s32.totalorder %s19, 0
      %s181 = scalar_select %p180, %s19, 0
      %s182 = sadd.s32 %s181, %s179
      %s183 = smul.addr %s182, 8
      %s184 = scalar_lea.vmem %s3, %s183
      %p185 = scmp.lt.s32.totalorder %s18, 1
      %s186 = scalar_select %p185, %s18, 1
      %p187 = scmp.lt.s32.totalorder %s19, 0
      %s188 = scalar_select %p187, %s19, 0
      %s189 = smul.addr %s186, 5
      %s190 = sadd.s32 %s188, %s189
      %s191 = smul.addr %s190, 4
      %s192 = scalar_lea.vmem %s0, %s191
      %p193 = scmp.lt.s32.totalorder %s18, 1
      %s194 = scalar_select %p193, %s18, 1
      %p195 = scmp.lt.s32.totalorder %s19, 0
      %s196 = scalar_select %p195, %s19, 0
      %s197 = sadd.s32 %s196, %s194
      %s198 = smul.addr %s197, 8
      %s199 = scalar_lea.vmem %s3, %s198
      %v201 = vld [vmem:[%s1] sm:$0xf]
      %v202 = vld [vmem:[%s192] sm:$0xf]
      %v203 = vld [vmem:[%s192 + $0x4] sm:$0xf]
      %v204 = vld [vmem:[%s192 + $0x8] sm:$0xf]
      %v205 = vld [vmem:[%s192 + $0xc] sm:$0xf]
      %v206 = vld [vmem:[%s192 + $0x10] sm:$0x3]
      %v207 = vld [vmem:[%s2] sm:$0xff]
      %209 = vset.pattern.permute.xlu0 0
      %210 = vperm.xlu0 %209, %v207
      %v211 = vpop.permute.xlu0 %210
      %v218 = vunpack.c.l.b16 %v202
      %v219 = vunpack.c.l.b16 %v203
      %v220 = vunpack.c.l.b16 %v204
      %v221 = vunpack.c.l.b16 %v205
      %v222 = vunpack.c.l.b16 %v206
      %v223 = vpack.c.b16 %v219, %v218
      %v224 = vpack.c.b16 %v221, %v220
      %v225 = vpack.c.b16 %v222, %v222
      %vm228 = vcmask 293888
      %v230 = vsel %vm228, %v201, 0
      %vm232 = vcmask 1041408
      %v234 = vsel %vm232, %v225, 0
      %236 = vmatprep.subr.bf16.mxu0 0
      %237 = vmatpush1.bf16.msra.mxu0 0
      %238 = vmatprep.subr.bf16.mxu0 0
      %239 = vmatpush1.bf16.msra.mxu0 0
      %240 = vmatprep.subr.bf16.mxu0 0
      %241 = vmatpush1.bf16.msra.mxu0 0
      %242 = vmatprep.subr.bf16.mxu0 0
      %243 = vmatpush1.bf16.msra.mxu0 0
      %244 = vmatprep.subr.bf16.mxu0 0
      %245 = vmatpush1.bf16.msra.mxu0 0
      %246 = vmatprep.subr.bf16.mxu0 0
      %247 = vmatpush1.bf16.msra.mxu0 %v234
      %248 = vmatprep.subr.bf16.mxu0 0
      %249 = vmatpush1.bf16.msra.mxu0 %v224
      %250 = vmatprep.subr.bf16.mxu0 0
      %251 = vmatpush1.bf16.msra.mxu0 %v223
      %252 = vmatprep.subr.bf16.mxu0 0
      %253 = vmatpush2.bf16.msra.mxu0 0
      %254 = vmatprep.subr.bf16.mxu0 0
      %255 = vmatpush2.bf16.msra.mxu0 0
      %256 = vmatprep.subr.bf16.mxu0 0
      %257 = vmatpush2.bf16.msra.mxu0 0
      %258 = vmatprep.subr.bf16.mxu0 0
      %259 = vmatpush2.bf16.msra.mxu0 0
      %260 = vmatprep.subr.bf16.mxu0 0
      %261 = vmatpush2.bf16.msra.mxu0 0
      %262 = vmatprep.subr.bf16.mxu0 0
      %263 = vmatpush2.bf16.msra.mxu0 0
      %264 = vmatprep.subr.bf16.mxu0 0
      %265 = vmatpush2.bf16.msra.mxu0 0
      %266 = vmatprep.subr.bf16.mxu0 0
      %267 = vmatpush2.bf16.msra.mxu0 0
      %268 = vmatprep.mubr.bf16.mxu0 0
      %269 = vmatmul.mubr.bf16.gmra.mxu0 %v230
      %v270 = vpop.f32.mrf.mxu0
      %v271 = vadd.f32 %v211, %v270
      %v272 = vpop.f32.mrf.mxu0
      %v273 = vpop.f32.mrf.mxu0
      %v274 = vpop.f32.mrf.mxu0
      %275 = vdwg.mxu0
      %vm276 = vcmp.gt.f32.partialorder %v271, 0.0
      %v277 = vmul.f32 %v271, 0.01
      %v278 = vsel %vm276, %v271, %v277
      %vm279 = vcmask 523264
      %280 = vst.msk [vmem:[%s199] sm:$0xff] %vm279, %v278
      %p281 = scmp.lt.s32.totalorder %s18, 1
      %s282 = scalar_select %p281, %s18, 1
      %p283 = scmp.lt.s32.totalorder %s19, 0
      %s284 = scalar_select %p283, %s19, 0
      %s285 = sadd.s32 %s284, %s282
      %s286 = smul.addr %s285, 8
      %s287 = scalar_lea.vmem %s3, %s286
      // Predicated region
      $region33: #{leaky_relu_conv2d.1} parent=31 // pred_check
        %p288 = pneg %p116
      $region34: #{leaky_relu_conv2d.1} parent=31 // pred_check_branch
        %290 = sbr.rel (%p288) target = $region36
      $region35: #{leaky_relu_conv2d.1} parent=31 // pred_region
        _
      $region36: #{leaky_relu_conv2d.1} parent=31 // pred_fallthru
        _
    $region32: #{leaky_relu_conv2d.1} parent=5 // pred_fallthru
      _
    %p291 = scmp.le.s32.totalorder 2, %s9
    // Predicated region
    $region37: #{leaky_relu_conv2d.1} parent=5 // pred_check
      %p292 = pneg %p291
    $region38: #{leaky_relu_conv2d.1} parent=5 // pred_check_branch
      %294 = sbr.rel (%p292) target = $region40
    $region39: #{leaky_relu_conv2d.1} parent=5 // pred_region
      %s295 = ssub.s32 %s9, 2
      // Predicated region
      $region41: #{leaky_relu_conv2d.1} parent=39 // pred_check
        %p296 = pneg %p122
      $region42: #{leaky_relu_conv2d.1} parent=39 // pred_check_branch
        %298 = sbr.rel (%p296) target = $region44
      $region43: #{leaky_relu_conv2d.1} parent=39 // pred_region
        %p299 = scmp.lt.s32.totalorder %s20, 1
        %s300 = scalar_select %p299, %s20, 1
        %p301 = scmp.lt.s32.totalorder %s21, 0
        %s302 = scalar_select %p301, %s21, 0
        %s303 = sadd.s32 %s302, %s300
        %s304 = smul.addr %s303, 8
        %s305 = scalar_lea.vmem %s3, %s304
      $region44: #{leaky_relu_conv2d.1} parent=39 // pred_fallthru
        _
    $region40: #{leaky_relu_conv2d.1} parent=5 // pred_fallthru
      _
  $region6: #{leaky_relu_conv2d.1} parent=0 // loop_footer
    %s13 = sadd.s32 1, %s9
  $region7: #{leaky_relu_conv2d.1} parent=0 // loop_footer_branch
    %8 = sbr.rel target = $region3
  $region8: #{leaky_relu_conv2d.1} parent=0 // loop_exit
    _

</llo_original>
